<compile_context>
chip_gen: v5e
topology: v5e:2x2
jax: 0.10.0
libtpu: 0.0.40
codegen_flags: <defaults>
</compile_context>

<pallas_src>
import functools

import jax
import jax.numpy as jnp
from jax.experimental import pallas as pl
from jax.experimental.pallas import tpu as pltpu


def _round_up(x, m):
    return (x + m - 1) // m * m


# --------------------------------- kernels ----------------------------------

def _fm_mxu_kernel(x_ref, g_ref, o_ref, *, precision):
    # x_ref: (tile_b, F*E) input tile (batch on sublanes, fields*emb on lanes).
    # g_ref: (F*E, E) constant block-sum matrix, same dtype as x.
    # o_ref: (1, tile_b) lane-dense output tile.
    x = x_ref[...]                                   # stays in HBM dtype (bf16 ok)
    xf = x.astype(jnp.float32)                       # single full-width cast
    # sum_f sum_e x^2 : one full-lane-width multiply + one XLU reduce.
    sum_of_square = jnp.sum(xf * xf, axis=-1)        # (tile_b,)
    # field sum on the MXU: s[b, e] = sum_f x[b, f, e]
    s = jnp.dot(x, g_ref[...],
                preferred_element_type=jnp.float32,
                precision=precision)                 # (tile_b, E) f32
    square_of_sum = jnp.sum(s * s, axis=-1)          # (tile_b,)
    o_ref[...] = (0.5 * (square_of_sum - sum_of_square))[None, :]


def _fm_vpu_kernel(x_ref, o_ref, *, num_fields, emb_dim):
    # Fallback used only when the constant G matrix would be too large for VMEM
    # (very large E).  sum-of-squares is still a single full-width op.
    xf = x_ref[...].astype(jnp.float32)              # (tile_b, F*E) f32, one cast
    sum_of_square = jnp.sum(xf * xf, axis=-1)        # (tile_b,)
    s = xf[:, 0:emb_dim]
    for f in range(1, num_fields):                   # static unroll of VPU adds
        s = s + xf[:, f * emb_dim:(f + 1) * emb_dim]
    square_of_sum = jnp.sum(s * s, axis=-1)
    o_ref[...] = (0.5 * (square_of_sum - sum_of_square))[None, :]


# --------------------------------- wrapper -----------------------------------

def _device_profile():
    """Generation-aware block-size / VMEM budget heuristics."""
    try:
        kind = jax.devices()[0].device_kind.lower()
    except Exception:  # pragma: no cover - e.g. no devices visible at trace time
        kind = ""
    if ("v5 lite" in kind) or ("v5e" in kind) or ("v5lite" in kind):
        # v5e: 16 MiB scoped-VMEM default, 128 MiB physical, ~0.82 TB/s.
        return dict(target_block=4 << 20, scoped=16 << 20,
                    physical=128 << 20, min_steps=8)
    if ("7x" in kind) or ("v7" in kind):
        # v7x: 32 MiB scoped default, 64 MiB physical, ~3.2 TB/s, 2 TensorCores.
        return dict(target_block=8 << 20, scoped=32 << 20,
                    physical=64 << 20, min_steps=16)
    # v6e / default.
    return dict(target_block=8 << 20, scoped=32 << 20,
                physical=128 << 20, min_steps=8)


def _choose_tile_b(batch, fe, itemsize, prof):
    row_bytes = _round_up(fe, 128) * itemsize        # lanes pad to 128 in VMEM
    tile_b = max(128, (prof["target_block"] // row_bytes) // 128 * 128)
    # Prefer enough grid steps for deep pipelining (and both v7x TensorCores).
    tile_for_grid = (batch // prof["min_steps"]) // 128 * 128
    if tile_for_grid >= 128:
        tile_b = min(tile_b, tile_for_grid)
    tile_b = min(tile_b, _round_up(batch, 128))
    return int(tile_b)


def fm_forward(x, *, tile_b=None):
    """FM second-order interaction.  x: (B, F, E) -> (B, 1) float32."""
    B, F, E = x.shape
    fe = F * E

    # Lane-dense 2-D layout; contiguous reshape, no HBM data movement.
    x2d = x.reshape(B, fe)
    itemsize = x2d.dtype.itemsize
    prof = _device_profile()

    if tile_b is None:
        tile_b = _choose_tile_b(B, fe, itemsize, prof)
    tile_b = max(128, _round_up(int(tile_b), 128))

    # Pad ragged batches with zero rows (they contribute exactly 0 to the cross
    # term and are sliced off below) so the grid divides evenly.
    B_pad = _round_up(B, tile_b)
    if B_pad != B:
        x2d = jnp.pad(x2d, ((0, B_pad - B), (0, 0)))

    grid = (B_pad // tile_b,)

    block_bytes = tile_b * _round_up(fe, 128) * itemsize
    # Conservative (f32-padded) VMEM footprint of G.
    g_vmem_bytes = _round_up(fe, 8) * _round_up(E, 128) * 4
    use_mxu = g_vmem_bytes <= (2 << 20)

    # Raise the scoped-VMEM limit if the double-buffered working set needs it,
    # keeping headroom under physical VMEM (matters on v7x: 64 MiB physical).
    needed = 2 * block_bytes + 2 * g_vmem_bytes + (4 << 20)
    vmem_limit = int(min(prof["physical"] - (8 << 20),
                         max(prof["scoped"], needed)))
    compiler_params = pltpu.CompilerParams(
        dimension_semantics=("parallel",),
        vmem_limit_bytes=vmem_limit,
    )
    # NOTE: for extremely large F*E rows the 128-row tile floor could still exceed
    # physical VMEM; chunking the fe axis with a second "arbitrary" grid dimension
    # would be the fix (not needed for FM-sized embeddings).

    if use_mxu:
        # Constant block-sum matrix G[f*E + e, e] = 1, same dtype as x so bf16
        # inputs feed the MXU directly (f32 accumulate).
        g = (jnp.arange(fe, dtype=jnp.int32)[:, None] % E
             == jnp.arange(E, dtype=jnp.int32)[None, :]).astype(x2d.dtype)
        # Full-f32 matmul precision when the input is f32 (G entries are 0/1, so
        # bf16 inputs are already exact on the MXU).
        precision = (jax.lax.Precision.HIGHEST
                     if x2d.dtype == jnp.float32 else None)
        kernel = functools.partial(_fm_mxu_kernel, precision=precision)
        out_row = pl.pallas_call(
            kernel,
            out_shape=jax.ShapeDtypeStruct((1, B_pad), jnp.float32),
            grid_spec=pltpu.PrefetchScalarGridSpec(
                num_scalar_prefetch=0,
                grid=grid,
                in_specs=[
                    pl.BlockSpec((tile_b, fe), lambda i: (i, 0)),
                    # Constant block index -> fetched once, stays VMEM-resident.
                    pl.BlockSpec((fe, E), lambda i: (0, 0)),
                ],
                out_specs=pl.BlockSpec((1, tile_b), lambda i: (0, i)),
            ),
            compiler_params=compiler_params,
            cost_estimate=pl.CostEstimate(
                flops=2 * B_pad * fe * E + 3 * B_pad * fe,
                transcendentals=0,
                bytes_accessed=(B_pad * fe * itemsize
                                + fe * E * itemsize + B_pad * 4),
            ),
        )(x2d, g)
    else:
        kernel = functools.partial(_fm_vpu_kernel, num_fields=F, emb_dim=E)
        out_row = pl.pallas_call(
            kernel,
            out_shape=jax.ShapeDtypeStruct((1, B_pad), jnp.float32),
            grid_spec=pltpu.PrefetchScalarGridSpec(
                num_scalar_prefetch=0,
                grid=grid,
                in_specs=[pl.BlockSpec((tile_b, fe), lambda i: (i, 0))],
                out_specs=pl.BlockSpec((1, tile_b), lambda i: (0, i)),
            ),
            compiler_params=compiler_params,
            cost_estimate=pl.CostEstimate(
                flops=4 * B_pad * fe,
                transcendentals=0,
                bytes_accessed=B_pad * fe * itemsize + B_pad * 4,
            ),
        )(x2d)

    return out_row.reshape(B_pad, 1)[:B]


def fm_reference(x):
    x = x.astype(jnp.float32)
    square_of_sum = jnp.sum(x, axis=1) ** 2
    sum_of_square = jnp.sum(x ** 2, axis=1)
    cross = square_of_sum - sum_of_square
    return 0.5 * jnp.sum(cross, axis=1, keepdims=True)


if __name__ == "__main__":
    # Small shapes consistent with the module: (batch, field_size, embedding_size).
    B, F, E = 8, 4, 32
    key = jax.random.PRNGKey(0)
    x = jax.random.normal(key, (B, F, E), dtype=jnp.float32)

    out = jax.block_until_ready(fm_forward(x))
    ref = fm_reference(x)
    assert out.shape == (B, 1), out.shape
    assert jnp.allclose(out, ref, atol=1e-3, rtol=1e-3), (out, ref)

    # Ragged batch / multi-step grid / E not a multiple of 128 — exercises the
    # padding path, the MXU field-sum, and the "parallel" grid axis.
    B2, F2, E2 = 600, 26, 16
    x2 = jax.random.normal(jax.random.PRNGKey(1), (B2, F2, E2), dtype=jnp.float32)
    out2 = jax.block_until_ready(fm_forward(x2, tile_b=256))
    ref2 = fm_reference(x2)
    assert out2.shape == (B2, 1), out2.shape
    assert jnp.allclose(out2, ref2, atol=5e-2, rtol=5e-3)

    # Narrow-dtype path: bf16 stays bf16 in HBM and feeds the MXU directly; only
    # one full-width f32 cast is done in-kernel (for the x^2 term).
    xb = x.astype(jnp.bfloat16)
    out_b = jax.block_until_ready(fm_forward(xb))
    ref_b = fm_reference(xb)
    assert jnp.allclose(out_b, ref_b, atol=1e-2, rtol=1e-2)

    print("KERNEL_OK")
</pallas_src>

<mosaic_0001>
module attributes {stable_mosaic.version = 11 : i64} {
  func.func @_fm_mxu_kernel(%arg0: i32, %arg1: memref<128x128xf32, #tpu.memory_space<vmem>>, %arg2: memref<128x32xf32, #tpu.memory_space<vmem>>, %arg3: memref<1x128xf32, #tpu.memory_space<vmem>>) attributes {dimension_semantics = [#tpu.dimension_semantics<parallel>], iteration_bounds = array<i64: 1>, scalar_prefetch = 0 : i64, scratch_operands = 0 : i64, tpu.core_type = #tpu.core_type<tc>, window_params = [{transform_indices = @transform_0, window_bounds = array<i64: 128, 128>}, {pipeline_mode = #tpu.pipeline_mode<synchronous>, transform_indices = @transform_1, window_bounds = array<i64: 128, 32>}, {transform_indices = @transform_2, window_bounds = array<i64: 1, 128>}]} {
    %c0 = arith.constant 0 : index
    %c0_0 = arith.constant 0 : index
    %0 = vector.load %arg1[%c0, %c0_0] : memref<128x128xf32, #tpu.memory_space<vmem>>, vector<128x128xf32>
    %1 = arith.mulf %0, %0 : vector<128x128xf32>
    %cst = arith.constant dense<0.000000e+00> : vector<128xf32>
    %2 = vector.multi_reduction <add>, %1, %cst [1] : vector<128x128xf32> to vector<128xf32>
    %c0_1 = arith.constant 0 : index
    %c0_2 = arith.constant 0 : index
    %3 = vector.load %arg2[%c0_1, %c0_2] : memref<128x32xf32, #tpu.memory_space<vmem>>, vector<128x32xf32>
    %cst_3 = arith.constant dense<0.000000e+00> : vector<128x32xf32>
    %4 = tpu.matmul %0, %3, %cst_3 {dimension_numbers = #tpu.dot_dimension_numbers<[1], [0], [0], [1], [0, 0, 1, 1], [], []>, precision = #tpu.contract_precision<fp32>} : vector<128x128xf32>, vector<128x32xf32>, vector<128x32xf32> -> vector<128x32xf32>
    %5 = arith.mulf %4, %4 : vector<128x32xf32>
    %cst_4 = arith.constant dense<0.000000e+00> : vector<128xf32>
    %6 = vector.multi_reduction <add>, %5, %cst_4 [1] : vector<128x32xf32> to vector<128xf32>
    %7 = arith.subf %6, %2 : vector<128xf32>
    %cst_5 = arith.constant 5.000000e-01 : f32
    %8 = vector.broadcast %cst_5 : f32 to vector<128xf32>
    %9 = arith.mulf %8, %7 : vector<128xf32>
    %10 = vector.shape_cast %9 : vector<128xf32> to vector<1x128xf32>
    %c0_6 = arith.constant 0 : index
    %c0_7 = arith.constant 0 : index
    %11 = vector.load %arg3[%c0_6, %c0_7] : memref<1x128xf32, #tpu.memory_space<vmem>>, vector<1x128xf32>
    tpu.vector_store %arg3[%c0_6, %c0_7], %10 {strides = array<i32>} : memref<1x128xf32, #tpu.memory_space<vmem>>, vector<1x128xf32>,
    return
  }
  func.func @transform_0(%arg0: i32) -> (i32, i32) {
    %c0_i32 = arith.constant 0 : i32
    %c0_i32_0 = arith.constant 0 : i32
    return %arg0, %c0_i32 : i32, i32
  }
  func.func @transform_1(%arg0: i32) -> (i32, i32) {
    %c0_i32 = arith.constant 0 : i32
    %c0_i32_0 = arith.constant 0 : i32
    %c0_i32_1 = arith.constant 0 : i32
    return %c0_i32, %c0_i32_0 : i32, i32
  }
  func.func @transform_2(%arg0: i32) -> (i32, i32) {
    %c0_i32 = arith.constant 0 : i32
    %c0_i32_0 = arith.constant 0 : i32
    return %c0_i32, %arg0 : i32, i32
  }
}

</mosaic_0001>

<llo_original>
// kernel: tpu_custom_call.1
$region0: #{tpu_custom_call.1}
  #allocation0 [shape = 'u32[]', space=smem, size = 0x4, offset = 0x4, fixed_abs, tag = 'smem constant byte address 0x4 - core index']
  #allocation1 [shape = 'u32[72,128]{1,0:T(1,128)}', space=vmem, size = 0x9000, scoped, tag = 'internal scratch']
  %s0 = inlined_call_operand.vmem [shape: f32[128,128], index: 0, kind: input, shape index: {}]
  %s1 = inlined_call_operand.vmem [shape: f32[128,32], index: 1, kind: input, shape index: {}]
  %s2 = inlined_call_operand.hbm [shape: f32[1,128], index: 2, kind: output, shape index: {}]
  %s3 = sld [smem:[#allocation0]]
  $region18: #{tpu_custom_call.1} parent=0
    _
  %s5 = ssub.s32 1, %s3
  %s6 = scalar_select 0, %s5, %s3
  $region1: #{tpu_custom_call.1} parent=0
    #allocation2 [shape = 'u8[512]{0}', space=vmem, size = 0x400, scoped, tag = 'output window, operand 0, single buffered']
    #allocation3 [shape = 's32[1]{0}', space=sflag, size = 0x4, scoped, tag = 'scoped memory for tpu_custom_call.1']
    %7 = vsyncpa [#allocation3], 0
    // Predicated region
    $region2: #{tpu_custom_call.1} parent=1 // pred_check
      _
    $region3: #{tpu_custom_call.1} parent=1 // pred_check_branch
      %9 = sbr.rel (0) target = $region5
    $region4: #{tpu_custom_call.1} parent=1 // pred_region
      _
    $region5: #{tpu_custom_call.1} parent=1 // pred_fallthru
      _
    // Predicated region
    $region6: #{tpu_custom_call.1} parent=1 // pred_check
      _
    $region7: #{tpu_custom_call.1} parent=1 // pred_check_branch
      %11 = sbr.rel (0) target = $region9
    $region8: #{tpu_custom_call.1} parent=1 // pred_region
      _
    $region9: #{tpu_custom_call.1} parent=1 // pred_fallthru
      _
    %v12 = vld [vmem:[%s0] sm:$0xff]
    %v13 = vld [vmem:[%s0 + $0x8] sm:$0xff]
    %v14 = vld [vmem:[%s0 + $0x10] sm:$0xff]
    %v15 = vld [vmem:[%s0 + $0x18] sm:$0xff]
    %v16 = vld [vmem:[%s0 + $0x20] sm:$0xff]
    %v17 = vld [vmem:[%s0 + $0x28] sm:$0xff]
    %v18 = vld [vmem:[%s0 + $0x30] sm:$0xff]
    %v19 = vld [vmem:[%s0 + $0x38] sm:$0xff]
    %v20 = vld [vmem:[%s0 + $0x40] sm:$0xff]
    %v21 = vld [vmem:[%s0 + $0x48] sm:$0xff]
    %v22 = vld [vmem:[%s0 + $0x50] sm:$0xff]
    %v23 = vld [vmem:[%s0 + $0x58] sm:$0xff]
    %v24 = vld [vmem:[%s0 + $0x60] sm:$0xff]
    %v25 = vld [vmem:[%s0 + $0x68] sm:$0xff]
    %v26 = vld [vmem:[%s0 + $0x70] sm:$0xff]
    %v27 = vld [vmem:[%s0 + $0x78] sm:$0xff]
    %v28 = vmul.f32 %v12, %v12
    %v29 = vmul.f32 %v13, %v13
    %v30 = vmul.f32 %v14, %v14
    %v31 = vmul.f32 %v15, %v15
    %v32 = vmul.f32 %v16, %v16
    %v33 = vmul.f32 %v17, %v17
    %v34 = vmul.f32 %v18, %v18
    %v35 = vmul.f32 %v19, %v19
    %v36 = vmul.f32 %v20, %v20
    %v37 = vmul.f32 %v21, %v21
    %v38 = vmul.f32 %v22, %v22
    %v39 = vmul.f32 %v23, %v23
    %v40 = vmul.f32 %v24, %v24
    %v41 = vmul.f32 %v25, %v25
    %v42 = vmul.f32 %v26, %v26
    %v43 = vmul.f32 %v27, %v27
    %44 = vadd.xlane.f32.xlu0 %v28
    %v45 = vpop.xlane.xlu0 %44
    %46 = vadd.xlane.f32.xlu0 %v29
    %v47 = vpop.xlane.xlu0 %46
    %48 = vadd.xlane.f32.xlu0 %v30
    %v49 = vpop.xlane.xlu0 %48
    %50 = vadd.xlane.f32.xlu0 %v31
    %v51 = vpop.xlane.xlu0 %50
    %52 = vadd.xlane.f32.xlu0 %v32
    %v53 = vpop.xlane.xlu0 %52
    %54 = vadd.xlane.f32.xlu0 %v33
    %v55 = vpop.xlane.xlu0 %54
    %56 = vadd.xlane.f32.xlu0 %v34
    %v57 = vpop.xlane.xlu0 %56
    %58 = vadd.xlane.f32.xlu0 %v35
    %v59 = vpop.xlane.xlu0 %58
    %60 = vadd.xlane.f32.xlu0 %v36
    %v61 = vpop.xlane.xlu0 %60
    %62 = vadd.xlane.f32.xlu0 %v37
    %v63 = vpop.xlane.xlu0 %62
    %64 = vadd.xlane.f32.xlu0 %v38
    %v65 = vpop.xlane.xlu0 %64
    %66 = vadd.xlane.f32.xlu0 %v39
    %v67 = vpop.xlane.xlu0 %66
    %68 = vadd.xlane.f32.xlu0 %v40
    %v69 = vpop.xlane.xlu0 %68
    %70 = vadd.xlane.f32.xlu0 %v41
    %v71 = vpop.xlane.xlu0 %70
    %72 = vadd.xlane.f32.xlu0 %v42
    %v73 = vpop.xlane.xlu0 %72
    %74 = vadd.xlane.f32.xlu0 %v43
    %v75 = vpop.xlane.xlu0 %74
    %v76 = vld [vmem:[%s1] sm:$0xff]
    %v77 = vld [vmem:[%s1 + $0x8] sm:$0xff]
    %v78 = vld [vmem:[%s1 + $0x10] sm:$0xff]
    %v79 = vld [vmem:[%s1 + $0x18] sm:$0xff]
    %v80 = vld [vmem:[%s1 + $0x20] sm:$0xff]
    %v81 = vld [vmem:[%s1 + $0x28] sm:$0xff]
    %v82 = vld [vmem:[%s1 + $0x30] sm:$0xff]
    %v83 = vld [vmem:[%s1 + $0x38] sm:$0xff]
    %v84 = vld [vmem:[%s1 + $0x40] sm:$0xff]
    %v85 = vld [vmem:[%s1 + $0x48] sm:$0xff]
    %v86 = vld [vmem:[%s1 + $0x50] sm:$0xff]
    %v87 = vld [vmem:[%s1 + $0x58] sm:$0xff]
    %v88 = vld [vmem:[%s1 + $0x60] sm:$0xff]
    %v89 = vld [vmem:[%s1 + $0x68] sm:$0xff]
    %v90 = vld [vmem:[%s1 + $0x70] sm:$0xff]
    %v91 = vld [vmem:[%s1 + $0x78] sm:$0xff]
    %v92 = vand.u32 %v91, 4294901760
    %93 = vmatpush.msra.mxu0 %v92
    %v94 = vand.u32 %v90, 4294901760
    %95 = vmatpush.msra.mxu0 %v94
    %v96 = vand.u32 %v89, 4294901760
    %97 = vmatpush.msra.mxu0 %v96
    %v98 = vand.u32 %v88, 4294901760
    %99 = vmatpush.msra.mxu0 %v98
    %v100 = vand.u32 %v87, 4294901760
    %101 = vmatpush.msra.mxu0 %v100
    %v102 = vand.u32 %v86, 4294901760
    %103 = vmatpush.msra.mxu0 %v102
    %v104 = vand.u32 %v85, 4294901760
    %105 = vmatpush.msra.mxu0 %v104
    %v106 = vand.u32 %v84, 4294901760
    %107 = vmatpush.msra.mxu0 %v106
    %v108 = vand.u32 %v83, 4294901760
    %109 = vmatpush.msra.mxu0 %v108
    %v110 = vand.u32 %v82, 4294901760
    %111 = vmatpush.msra.mxu0 %v110
    %v112 = vand.u32 %v81, 4294901760
    %113 = vmatpush.msra.mxu0 %v112
    %v114 = vand.u32 %v80, 4294901760
    %115 = vmatpush.msra.mxu0 %v114
    %v116 = vand.u32 %v79, 4294901760
    %117 = vmatpush.msra.mxu0 %v116
    %v118 = vand.u32 %v78, 4294901760
    %119 = vmatpush.msra.mxu0 %v118
    %v120 = vand.u32 %v77, 4294901760
    %121 = vmatpush.msra.mxu0 %v120
    %v122 = vand.u32 %v76, 4294901760
    %123 = vmatpush.msra.mxu0 %v122
    %v124 = vand.u32 %v12, 4294901760
    %v125 = vsub.f32 %v12, %v124
    %v126 = vand.u32 %v125, 4294901760
    %v127 = vsub.f32 %v125, %v126
    %v128 = vand.u32 %v127, 4294901760
    %129 = vmatmul.f32.gmra.mxu0 %v128
    %v130 = vpop.f32.mrf.mxu0
    %v131 = vadd.f32 0.0, %v130
    %v132 = vand.u32 %v13, 4294901760
    %v133 = vsub.f32 %v13, %v132
    %v134 = vand.u32 %v133, 4294901760
    %v135 = vsub.f32 %v133, %v134
    %v136 = vand.u32 %v135, 4294901760
    %137 = vmatmul.f32.gmra.mxu0 %v136
    %v138 = vpop.f32.mrf.mxu0
    %v139 = vadd.f32 0.0, %v138
    %v140 = vand.u32 %v14, 4294901760
    %v141 = vsub.f32 %v14, %v140
    %v142 = vand.u32 %v141, 4294901760
    %v143 = vsub.f32 %v141, %v142
    %v144 = vand.u32 %v143, 4294901760
    %145 = vmatmul.f32.gmra.mxu0 %v144
    %v146 = vpop.f32.mrf.mxu0
    %v147 = vadd.f32 0.0, %v146
    %v148 = vand.u32 %v15, 4294901760
    %v149 = vsub.f32 %v15, %v148
    %v150 = vand.u32 %v149, 4294901760
    %v151 = vsub.f32 %v149, %v150
    %v152 = vand.u32 %v151, 4294901760
    %153 = vmatmul.f32.gmra.mxu0 %v152
    %v154 = vpop.f32.mrf.mxu0
    %v155 = vadd.f32 0.0, %v154
    %v156 = vand.u32 %v16, 4294901760
    %v157 = vsub.f32 %v16, %v156
    %v158 = vand.u32 %v157, 4294901760
    %v159 = vsub.f32 %v157, %v158
    %v160 = vand.u32 %v159, 4294901760
    %161 = vmatmul.f32.gmra.mxu0 %v160
    %v162 = vpop.f32.mrf.mxu0
    %v163 = vadd.f32 0.0, %v162
    %v164 = vand.u32 %v17, 4294901760
    %v165 = vsub.f32 %v17, %v164
    %v166 = vand.u32 %v165, 4294901760
    %v167 = vsub.f32 %v165, %v166
    %v168 = vand.u32 %v167, 4294901760
    %169 = vmatmul.f32.gmra.mxu0 %v168
    %v170 = vpop.f32.mrf.mxu0
    %v171 = vadd.f32 0.0, %v170
    %v172 = vand.u32 %v18, 4294901760
    %v173 = vsub.f32 %v18, %v172
    %v174 = vand.u32 %v173, 4294901760
    %v175 = vsub.f32 %v173, %v174
    %v176 = vand.u32 %v175, 4294901760
    %177 = vmatmul.f32.gmra.mxu0 %v176
    %v178 = vpop.f32.mrf.mxu0
    %v179 = vadd.f32 0.0, %v178
    %v180 = vand.u32 %v19, 4294901760
    %v181 = vsub.f32 %v19, %v180
    %v182 = vand.u32 %v181, 4294901760
    %v183 = vsub.f32 %v181, %v182
    %v184 = vand.u32 %v183, 4294901760
    %185 = vmatmul.f32.gmra.mxu0 %v184
    %v186 = vpop.f32.mrf.mxu0
    %v187 = vadd.f32 0.0, %v186
    %v188 = vand.u32 %v20, 4294901760
    %v189 = vsub.f32 %v20, %v188
    %v190 = vand.u32 %v189, 4294901760
    %v191 = vsub.f32 %v189, %v190
    %v192 = vand.u32 %v191, 4294901760
    %193 = vmatmul.f32.gmra.mxu0 %v192
    %v194 = vpop.f32.mrf.mxu0
    %v195 = vadd.f32 0.0, %v194
    %v196 = vand.u32 %v21, 4294901760
    %v197 = vsub.f32 %v21, %v196
    %v198 = vand.u32 %v197, 4294901760
    %v199 = vsub.f32 %v197, %v198
    %v200 = vand.u32 %v199, 4294901760
    %201 = vmatmul.f32.gmra.mxu0 %v200
    %v202 = vpop.f32.mrf.mxu0
    %v203 = vadd.f32 0.0, %v202
    %v204 = vand.u32 %v22, 4294901760
    %v205 = vsub.f32 %v22, %v204
    %v206 = vand.u32 %v205, 4294901760
    %v207 = vsub.f32 %v205, %v206
    %v208 = vand.u32 %v207, 4294901760
    %209 = vmatmul.f32.gmra.mxu0 %v208
    %v210 = vpop.f32.mrf.mxu0
    %v211 = vadd.f32 0.0, %v210
    %v212 = vand.u32 %v23, 4294901760
    %v213 = vsub.f32 %v23, %v212
    %v214 = vand.u32 %v213, 4294901760
    %v215 = vsub.f32 %v213, %v214
    %v216 = vand.u32 %v215, 4294901760
    %217 = vmatmul.f32.gmra.mxu0 %v216
    %v218 = vpop.f32.mrf.mxu0
    %v219 = vadd.f32 0.0, %v218
    %v220 = vand.u32 %v24, 4294901760
    %v221 = vsub.f32 %v24, %v220
    %v222 = vand.u32 %v221, 4294901760
    %v223 = vsub.f32 %v221, %v222
    %v224 = vand.u32 %v223, 4294901760
    %225 = vmatmul.f32.gmra.mxu0 %v224
    %v226 = vpop.f32.mrf.mxu0
    %v227 = vadd.f32 0.0, %v226
    %v228 = vand.u32 %v25, 4294901760
    %v229 = vsub.f32 %v25, %v228
    %v230 = vand.u32 %v229, 4294901760
    %v231 = vsub.f32 %v229, %v230
    %v232 = vand.u32 %v231, 4294901760
    %233 = vmatmul.f32.gmra.mxu0 %v232
    %v234 = vpop.f32.mrf.mxu0
    %v235 = vadd.f32 0.0, %v234
    %v236 = vand.u32 %v26, 4294901760
    %v237 = vsub.f32 %v26, %v236
    %v238 = vand.u32 %v237, 4294901760
    %v239 = vsub.f32 %v237, %v238
    %v240 = vand.u32 %v239, 4294901760
    %241 = vmatmul.f32.gmra.mxu0 %v240
    %v242 = vpop.f32.mrf.mxu0
    %v243 = vadd.f32 0.0, %v242
    %v244 = vand.u32 %v27, 4294901760
    %v245 = vsub.f32 %v27, %v244
    %v246 = vand.u32 %v245, 4294901760
    %v247 = vsub.f32 %v245, %v246
    %v248 = vand.u32 %v247, 4294901760
    %249 = vmatmul.f32.gmra.mxu0 %v248
    %v250 = vpop.f32.mrf.mxu0
    %v251 = vadd.f32 0.0, %v250
    %252 = vdwg.mxu0
    %v253 = vand.u32 %v91, 4294901760
    %v254 = vsub.f32 %v91, %v253
    %v255 = vand.u32 %v254, 4294901760
    %v256 = vsub.f32 %v254, %v255
    %v257 = vand.u32 %v256, 4294901760
    %258 = vmatpush.msra.mxu0 %v257
    %v259 = vand.u32 %v90, 4294901760
    %v260 = vsub.f32 %v90, %v259
    %v261 = vand.u32 %v260, 4294901760
    %v262 = vsub.f32 %v260, %v261
    %v263 = vand.u32 %v262, 4294901760
    %264 = vmatpush.msra.mxu0 %v263
    %v265 = vand.u32 %v89, 4294901760
    %v266 = vsub.f32 %v89, %v265
    %v267 = vand.u32 %v266, 4294901760
    %v268 = vsub.f32 %v266, %v267
    %v269 = vand.u32 %v268, 4294901760
    %270 = vmatpush.msra.mxu0 %v269
    %v271 = vand.u32 %v88, 4294901760
    %v272 = vsub.f32 %v88, %v271
    %v273 = vand.u32 %v272, 4294901760
    %v274 = vsub.f32 %v272, %v273
    %v275 = vand.u32 %v274, 4294901760
    %276 = vmatpush.msra.mxu0 %v275
    %v277 = vand.u32 %v87, 4294901760
    %v278 = vsub.f32 %v87, %v277
    %v279 = vand.u32 %v278, 4294901760
    %v280 = vsub.f32 %v278, %v279
    %v281 = vand.u32 %v280, 4294901760
    %282 = vmatpush.msra.mxu0 %v281
    %v283 = vand.u32 %v86, 4294901760
    %v284 = vsub.f32 %v86, %v283
    %v285 = vand.u32 %v284, 4294901760
    %v286 = vsub.f32 %v284, %v285
    %v287 = vand.u32 %v286, 4294901760
    %288 = vmatpush.msra.mxu0 %v287
    %v289 = vand.u32 %v85, 4294901760
    %v290 = vsub.f32 %v85, %v289
    %v291 = vand.u32 %v290, 4294901760
    %v292 = vsub.f32 %v290, %v291
    %v293 = vand.u32 %v292, 4294901760
    %294 = vmatpush.msra.mxu0 %v293
    %v295 = vand.u32 %v84, 4294901760
    %v296 = vsub.f32 %v84, %v295
    %v297 = vand.u32 %v296, 4294901760
    %v298 = vsub.f32 %v296, %v297
    %v299 = vand.u32 %v298, 4294901760
    %300 = vmatpush.msra.mxu0 %v299
    %v301 = vand.u32 %v83, 4294901760
    %v302 = vsub.f32 %v83, %v301
    %v303 = vand.u32 %v302, 4294901760
    %v304 = vsub.f32 %v302, %v303
    %v305 = vand.u32 %v304, 4294901760
    %306 = vmatpush.msra.mxu0 %v305
    %v307 = vand.u32 %v82, 4294901760
    %v308 = vsub.f32 %v82, %v307
    %v309 = vand.u32 %v308, 4294901760
    %v310 = vsub.f32 %v308, %v309
    %v311 = vand.u32 %v310, 4294901760
    %312 = vmatpush.msra.mxu0 %v311
    %v313 = vand.u32 %v81, 4294901760
    %v314 = vsub.f32 %v81, %v313
    %v315 = vand.u32 %v314, 4294901760
    %v316 = vsub.f32 %v314, %v315
    %v317 = vand.u32 %v316, 4294901760
    %318 = vmatpush.msra.mxu0 %v317
    %v319 = vand.u32 %v80, 4294901760
    %v320 = vsub.f32 %v80, %v319
    %v321 = vand.u32 %v320, 4294901760
    %v322 = vsub.f32 %v320, %v321
    %v323 = vand.u32 %v322, 4294901760
    %324 = vmatpush.msra.mxu0 %v323
    %v325 = vand.u32 %v79, 4294901760
    %v326 = vsub.f32 %v79, %v325
    %v327 = vand.u32 %v326, 4294901760
    %v328 = vsub.f32 %v326, %v327
    %v329 = vand.u32 %v328, 4294901760
    %330 = vmatpush.msra.mxu0 %v329
    %v331 = vand.u32 %v78, 4294901760
    %v332 = vsub.f32 %v78, %v331
    %v333 = vand.u32 %v332, 4294901760
    %v334 = vsub.f32 %v332, %v333
    %v335 = vand.u32 %v334, 4294901760
    %336 = vmatpush.msra.mxu0 %v335
    %v337 = vand.u32 %v77, 4294901760
    %v338 = vsub.f32 %v77, %v337
    %v339 = vand.u32 %v338, 4294901760
    %v340 = vsub.f32 %v338, %v339
    %v341 = vand.u32 %v340, 4294901760
    %342 = vmatpush.msra.mxu0 %v341
    %v343 = vand.u32 %v76, 4294901760
    %v344 = vsub.f32 %v76, %v343
    %v345 = vand.u32 %v344, 4294901760
    %v346 = vsub.f32 %v344, %v345
    %v347 = vand.u32 %v346, 4294901760
    %348 = vmatpush.msra.mxu0 %v347
    %v349 = vand.u32 %v12, 4294901760
    %350 = vmatmul.f32.gmra.mxu0 %v349
    %v351 = vpop.f32.mrf.mxu0
    %v352 = vadd.f32 %v131, %v351
    %v353 = vand.u32 %v13, 4294901760
    %354 = vmatmul.f32.gmra.mxu0 %v353
    %v355 = vpop.f32.mrf.mxu0
    %v356 = vadd.f32 %v139, %v355
    %v357 = vand.u32 %v14, 4294901760
    %358 = vmatmul.f32.gmra.mxu0 %v357
    %v359 = vpop.f32.mrf.mxu0
    %v360 = vadd.f32 %v147, %v359
    %v361 = vand.u32 %v15, 4294901760
    %362 = vmatmul.f32.gmra.mxu0 %v361
    %v363 = vpop.f32.mrf.mxu0
    %v364 = vadd.f32 %v155, %v363
    %v365 = vand.u32 %v16, 4294901760
    %366 = vmatmul.f32.gmra.mxu0 %v365
    %v367 = vpop.f32.mrf.mxu0
    %v368 = vadd.f32 %v163, %v367
    %v369 = vand.u32 %v17, 4294901760
    %370 = vmatmul.f32.gmra.mxu0 %v369
    %v371 = vpop.f32.mrf.mxu0
    %v372 = vadd.f32 %v171, %v371
    %v373 = vand.u32 %v18, 4294901760
    %374 = vmatmul.f32.gmra.mxu0 %v373
    %v375 = vpop.f32.mrf.mxu0
    %v376 = vadd.f32 %v179, %v375
    %v377 = vand.u32 %v19, 4294901760
    %378 = vmatmul.f32.gmra.mxu0 %v377
    %v379 = vpop.f32.mrf.mxu0
    %v380 = vadd.f32 %v187, %v379
    %v381 = vand.u32 %v20, 4294901760
    %382 = vmatmul.f32.gmra.mxu0 %v381
    %v383 = vpop.f32.mrf.mxu0
    %v384 = vadd.f32 %v195, %v383
    %v385 = vand.u32 %v21, 4294901760
    %386 = vmatmul.f32.gmra.mxu0 %v385
    %v387 = vpop.f32.mrf.mxu0
    %v388 = vadd.f32 %v203, %v387
    %v389 = vand.u32 %v22, 4294901760
    %390 = vmatmul.f32.gmra.mxu0 %v389
    %v391 = vpop.f32.mrf.mxu0
    %v392 = vadd.f32 %v211, %v391
    %v393 = vand.u32 %v23, 4294901760
    %394 = vmatmul.f32.gmra.mxu0 %v393
    %v395 = vpop.f32.mrf.mxu0
    %v396 = vadd.f32 %v219, %v395
    %v397 = vand.u32 %v24, 4294901760
    %398 = vmatmul.f32.gmra.mxu0 %v397
    %v399 = vpop.f32.mrf.mxu0
    %v400 = vadd.f32 %v227, %v399
    %v401 = vand.u32 %v25, 4294901760
    %402 = vmatmul.f32.gmra.mxu0 %v401
    %v403 = vpop.f32.mrf.mxu0
    %v404 = vadd.f32 %v235, %v403
    %v405 = vand.u32 %v26, 4294901760
    %406 = vmatmul.f32.gmra.mxu0 %v405
    %v407 = vpop.f32.mrf.mxu0
    %v408 = vadd.f32 %v243, %v407
    %v409 = vand.u32 %v27, 4294901760
    %410 = vmatmul.f32.gmra.mxu0 %v409
    %v411 = vpop.f32.mrf.mxu0
    %v412 = vadd.f32 %v251, %v411
    %413 = vdwg.mxu0
    %v414 = vand.u32 %v91, 4294901760
    %v415 = vsub.f32 %v91, %v414
    %416 = vmatpush.msra.mxu0 %v415
    %v417 = vand.u32 %v90, 4294901760
    %v418 = vsub.f32 %v90, %v417
    %419 = vmatpush.msra.mxu0 %v418
    %v420 = vand.u32 %v89, 4294901760
    %v421 = vsub.f32 %v89, %v420
    %422 = vmatpush.msra.mxu0 %v421
    %v423 = vand.u32 %v88, 4294901760
    %v424 = vsub.f32 %v88, %v423
    %425 = vmatpush.msra.mxu0 %v424
    %v426 = vand.u32 %v87, 4294901760
    %v427 = vsub.f32 %v87, %v426
    %428 = vmatpush.msra.mxu0 %v427
    %v429 = vand.u32 %v86, 4294901760
    %v430 = vsub.f32 %v86, %v429
    %431 = vmatpush.msra.mxu0 %v430
    %v432 = vand.u32 %v85, 4294901760
    %v433 = vsub.f32 %v85, %v432
    %434 = vmatpush.msra.mxu0 %v433
    %v435 = vand.u32 %v84, 4294901760
    %v436 = vsub.f32 %v84, %v435
    %437 = vmatpush.msra.mxu0 %v436
    %v438 = vand.u32 %v83, 4294901760
    %v439 = vsub.f32 %v83, %v438
    %440 = vmatpush.msra.mxu0 %v439
    %v441 = vand.u32 %v82, 4294901760
    %v442 = vsub.f32 %v82, %v441
    %443 = vmatpush.msra.mxu0 %v442
    %v444 = vand.u32 %v81, 4294901760
    %v445 = vsub.f32 %v81, %v444
    %446 = vmatpush.msra.mxu0 %v445
    %v447 = vand.u32 %v80, 4294901760
    %v448 = vsub.f32 %v80, %v447
    %449 = vmatpush.msra.mxu0 %v448
    %v450 = vand.u32 %v79, 4294901760
    %v451 = vsub.f32 %v79, %v450
    %452 = vmatpush.msra.mxu0 %v451
    %v453 = vand.u32 %v78, 4294901760
    %v454 = vsub.f32 %v78, %v453
    %455 = vmatpush.msra.mxu0 %v454
    %v456 = vand.u32 %v77, 4294901760
    %v457 = vsub.f32 %v77, %v456
    %458 = vmatpush.msra.mxu0 %v457
    %v459 = vand.u32 %v76, 4294901760
    %v460 = vsub.f32 %v76, %v459
    %461 = vmatpush.msra.mxu0 %v460
    %v462 = vand.u32 %v12, 4294901760
    %v463 = vsub.f32 %v12, %v462
    %464 = vmatmul.f32.gmra.mxu0 %v463
    %v465 = vpop.f32.mrf.mxu0
    %v466 = vadd.f32 %v352, %v465
    %v467 = vand.u32 %v13, 4294901760
    %v468 = vsub.f32 %v13, %v467
    %469 = vmatmul.f32.gmra.mxu0 %v468
    %v470 = vpop.f32.mrf.mxu0
    %v471 = vadd.f32 %v356, %v470
    %v472 = vand.u32 %v14, 4294901760
    %v473 = vsub.f32 %v14, %v472
    %474 = vmatmul.f32.gmra.mxu0 %v473
    %v475 = vpop.f32.mrf.mxu0
    %v476 = vadd.f32 %v360, %v475
    %v477 = vand.u32 %v15, 4294901760
    %v478 = vsub.f32 %v15, %v477
    %479 = vmatmul.f32.gmra.mxu0 %v478
    %v480 = vpop.f32.mrf.mxu0
    %v481 = vadd.f32 %v364, %v480
    %v482 = vand.u32 %v16, 4294901760
    %v483 = vsub.f32 %v16, %v482
    %484 = vmatmul.f32.gmra.mxu0 %v483
    %v485 = vpop.f32.mrf.mxu0
    %v486 = vadd.f32 %v368, %v485
    %v487 = vand.u32 %v17, 4294901760
    %v488 = vsub.f32 %v17, %v487
    %489 = vmatmul.f32.gmra.mxu0 %v488
    %v490 = vpop.f32.mrf.mxu0
    %v491 = vadd.f32 %v372, %v490
    %v492 = vand.u32 %v18, 4294901760
    %v493 = vsub.f32 %v18, %v492
    %494 = vmatmul.f32.gmra.mxu0 %v493
    %v495 = vpop.f32.mrf.mxu0
    %v496 = vadd.f32 %v376, %v495
    %v497 = vand.u32 %v19, 4294901760
    %v498 = vsub.f32 %v19, %v497
    %499 = vmatmul.f32.gmra.mxu0 %v498
    %v500 = vpop.f32.mrf.mxu0
    %v501 = vadd.f32 %v380, %v500
    %v502 = vand.u32 %v20, 4294901760
    %v503 = vsub.f32 %v20, %v502
    %504 = vmatmul.f32.gmra.mxu0 %v503
    %v505 = vpop.f32.mrf.mxu0
    %v506 = vadd.f32 %v384, %v505
    %v507 = vand.u32 %v21, 4294901760
    %v508 = vsub.f32 %v21, %v507
    %509 = vmatmul.f32.gmra.mxu0 %v508
    %v510 = vpop.f32.mrf.mxu0
    %v511 = vadd.f32 %v388, %v510
    %v512 = vand.u32 %v22, 4294901760
    %v513 = vsub.f32 %v22, %v512
    %514 = vmatmul.f32.gmra.mxu0 %v513
    %v515 = vpop.f32.mrf.mxu0
    %v516 = vadd.f32 %v392, %v515
    %v517 = vand.u32 %v23, 4294901760
    %v518 = vsub.f32 %v23, %v517
    %519 = vmatmul.f32.gmra.mxu0 %v518
    %v520 = vpop.f32.mrf.mxu0
    %v521 = vadd.f32 %v396, %v520
    %v522 = vand.u32 %v24, 4294901760
    %v523 = vsub.f32 %v24, %v522
    %524 = vmatmul.f32.gmra.mxu0 %v523
    %v525 = vpop.f32.mrf.mxu0
    %v526 = vadd.f32 %v400, %v525
    %v527 = vand.u32 %v25, 4294901760
    %v528 = vsub.f32 %v25, %v527
    %529 = vmatmul.f32.gmra.mxu0 %v528
    %v530 = vpop.f32.mrf.mxu0
    %v531 = vadd.f32 %v404, %v530
    %v532 = vand.u32 %v26, 4294901760
    %v533 = vsub.f32 %v26, %v532
    %534 = vmatmul.f32.gmra.mxu0 %v533
    %v535 = vpop.f32.mrf.mxu0
    %v536 = vadd.f32 %v408, %v535
    %v537 = vand.u32 %v27, 4294901760
    %v538 = vsub.f32 %v27, %v537
    %539 = vmatmul.f32.gmra.mxu0 %v538
    %v540 = vpop.f32.mrf.mxu0
    %v541 = vadd.f32 %v412, %v540
    %542 = vdwg.mxu0
    %v543 = vand.u32 %v91, 4294901760
    %544 = vmatpush.msra.mxu0 %v543
    %v545 = vand.u32 %v90, 4294901760
    %546 = vmatpush.msra.mxu0 %v545
    %v547 = vand.u32 %v89, 4294901760
    %548 = vmatpush.msra.mxu0 %v547
    %v549 = vand.u32 %v88, 4294901760
    %550 = vmatpush.msra.mxu0 %v549
    %v551 = vand.u32 %v87, 4294901760
    %552 = vmatpush.msra.mxu0 %v551
    %v553 = vand.u32 %v86, 4294901760
    %554 = vmatpush.msra.mxu0 %v553
    %v555 = vand.u32 %v85, 4294901760
    %556 = vmatpush.msra.mxu0 %v555
    %v557 = vand.u32 %v84, 4294901760
    %558 = vmatpush.msra.mxu0 %v557
    %v559 = vand.u32 %v83, 4294901760
    %560 = vmatpush.msra.mxu0 %v559
    %v561 = vand.u32 %v82, 4294901760
    %562 = vmatpush.msra.mxu0 %v561
    %v563 = vand.u32 %v81, 4294901760
    %564 = vmatpush.msra.mxu0 %v563
    %v565 = vand.u32 %v80, 4294901760
    %566 = vmatpush.msra.mxu0 %v565
    %v567 = vand.u32 %v79, 4294901760
    %568 = vmatpush.msra.mxu0 %v567
    %v569 = vand.u32 %v78, 4294901760
    %570 = vmatpush.msra.mxu0 %v569
    %v571 = vand.u32 %v77, 4294901760
    %572 = vmatpush.msra.mxu0 %v571
    %v573 = vand.u32 %v76, 4294901760
    %574 = vmatpush.msra.mxu0 %v573
    %v575 = vand.u32 %v12, 4294901760
    %v576 = vsub.f32 %v12, %v575
    %v577 = vand.u32 %v576, 4294901760
    %578 = vmatmul.f32.gmra.mxu0 %v577
    %v579 = vpop.f32.mrf.mxu0
    %v580 = vadd.f32 %v466, %v579
    %v581 = vand.u32 %v13, 4294901760
    %v582 = vsub.f32 %v13, %v581
    %v583 = vand.u32 %v582, 4294901760
    %584 = vmatmul.f32.gmra.mxu0 %v583
    %v585 = vpop.f32.mrf.mxu0
    %v586 = vadd.f32 %v471, %v585
    %v587 = vand.u32 %v14, 4294901760
    %v588 = vsub.f32 %v14, %v587
    %v589 = vand.u32 %v588, 4294901760
    %590 = vmatmul.f32.gmra.mxu0 %v589
    %v591 = vpop.f32.mrf.mxu0
    %v592 = vadd.f32 %v476, %v591
    %v593 = vand.u32 %v15, 4294901760
    %v594 = vsub.f32 %v15, %v593
    %v595 = vand.u32 %v594, 4294901760
    %596 = vmatmul.f32.gmra.mxu0 %v595
    %v597 = vpop.f32.mrf.mxu0
    %v598 = vadd.f32 %v481, %v597
    %v599 = vand.u32 %v16, 4294901760
    %v600 = vsub.f32 %v16, %v599
    %v601 = vand.u32 %v600, 4294901760
    %602 = vmatmul.f32.gmra.mxu0 %v601
    %v603 = vpop.f32.mrf.mxu0
    %v604 = vadd.f32 %v486, %v603
    %v605 = vand.u32 %v17, 4294901760
    %v606 = vsub.f32 %v17, %v605
    %v607 = vand.u32 %v606, 4294901760
    %608 = vmatmul.f32.gmra.mxu0 %v607
    %v609 = vpop.f32.mrf.mxu0
    %v610 = vadd.f32 %v491, %v609
    %v611 = vand.u32 %v18, 4294901760
    %v612 = vsub.f32 %v18, %v611
    %v613 = vand.u32 %v612, 4294901760
    %614 = vmatmul.f32.gmra.mxu0 %v613
    %v615 = vpop.f32.mrf.mxu0
    %v616 = vadd.f32 %v496, %v615
    %v617 = vand.u32 %v19, 4294901760
    %v618 = vsub.f32 %v19, %v617
    %v619 = vand.u32 %v618, 4294901760
    %620 = vmatmul.f32.gmra.mxu0 %v619
    %v621 = vpop.f32.mrf.mxu0
    %v622 = vadd.f32 %v501, %v621
    %v623 = vand.u32 %v20, 4294901760
    %v624 = vsub.f32 %v20, %v623
    %v625 = vand.u32 %v624, 4294901760
    %626 = vmatmul.f32.gmra.mxu0 %v625
    %v627 = vpop.f32.mrf.mxu0
    %v628 = vadd.f32 %v506, %v627
    %v629 = vand.u32 %v21, 4294901760
    %v630 = vsub.f32 %v21, %v629
    %v631 = vand.u32 %v630, 4294901760
    %632 = vmatmul.f32.gmra.mxu0 %v631
    %v633 = vpop.f32.mrf.mxu0
    %v634 = vadd.f32 %v511, %v633
    %v635 = vand.u32 %v22, 4294901760
    %v636 = vsub.f32 %v22, %v635
    %v637 = vand.u32 %v636, 4294901760
    %638 = vmatmul.f32.gmra.mxu0 %v637
    %v639 = vpop.f32.mrf.mxu0
    %v640 = vadd.f32 %v516, %v639
    %v641 = vand.u32 %v23, 4294901760
    %v642 = vsub.f32 %v23, %v641
    %v643 = vand.u32 %v642, 4294901760
    %644 = vmatmul.f32.gmra.mxu0 %v643
    %v645 = vpop.f32.mrf.mxu0
    %v646 = vadd.f32 %v521, %v645
    %v647 = vand.u32 %v24, 4294901760
    %v648 = vsub.f32 %v24, %v647
    %v649 = vand.u32 %v648, 4294901760
    %650 = vmatmul.f32.gmra.mxu0 %v649
    %v651 = vpop.f32.mrf.mxu0
    %v652 = vadd.f32 %v526, %v651
    %v653 = vand.u32 %v25, 4294901760
    %v654 = vsub.f32 %v25, %v653
    %v655 = vand.u32 %v654, 4294901760
    %656 = vmatmul.f32.gmra.mxu0 %v655
    %v657 = vpop.f32.mrf.mxu0
    %v658 = vadd.f32 %v531, %v657
    %v659 = vand.u32 %v26, 4294901760
    %v660 = vsub.f32 %v26, %v659
    %v661 = vand.u32 %v660, 4294901760
    %662 = vmatmul.f32.gmra.mxu0 %v661
    %v663 = vpop.f32.mrf.mxu0
    %v664 = vadd.f32 %v536, %v663
    %v665 = vand.u32 %v27, 4294901760
    %v666 = vsub.f32 %v27, %v665
    %v667 = vand.u32 %v666, 4294901760
    %668 = vmatmul.f32.gmra.mxu0 %v667
    %v669 = vpop.f32.mrf.mxu0
    %v670 = vadd.f32 %v541, %v669
    %671 = vdwg.mxu0
    %v672 = vand.u32 %v91, 4294901760
    %v673 = vsub.f32 %v91, %v672
    %v674 = vand.u32 %v673, 4294901760
    %675 = vmatpush.msra.mxu0 %v674
    %v676 = vand.u32 %v90, 4294901760
    %v677 = vsub.f32 %v90, %v676
    %v678 = vand.u32 %v677, 4294901760
    %679 = vmatpush.msra.mxu0 %v678
    %v680 = vand.u32 %v89, 4294901760
    %v681 = vsub.f32 %v89, %v680
    %v682 = vand.u32 %v681, 4294901760
    %683 = vmatpush.msra.mxu0 %v682
    %v684 = vand.u32 %v88, 4294901760
    %v685 = vsub.f32 %v88, %v684
    %v686 = vand.u32 %v685, 4294901760
    %687 = vmatpush.msra.mxu0 %v686
    %v688 = vand.u32 %v87, 4294901760
    %v689 = vsub.f32 %v87, %v688
    %v690 = vand.u32 %v689, 4294901760
    %691 = vmatpush.msra.mxu0 %v690
    %v692 = vand.u32 %v86, 4294901760
    %v693 = vsub.f32 %v86, %v692
    %v694 = vand.u32 %v693, 4294901760
    %695 = vmatpush.msra.mxu0 %v694
    %v696 = vand.u32 %v85, 4294901760
    %v697 = vsub.f32 %v85, %v696
    %v698 = vand.u32 %v697, 4294901760
    %699 = vmatpush.msra.mxu0 %v698
    %v700 = vand.u32 %v84, 4294901760
    %v701 = vsub.f32 %v84, %v700
    %v702 = vand.u32 %v701, 4294901760
    %703 = vmatpush.msra.mxu0 %v702
    %v704 = vand.u32 %v83, 4294901760
    %v705 = vsub.f32 %v83, %v704
    %v706 = vand.u32 %v705, 4294901760
    %707 = vmatpush.msra.mxu0 %v706
    %v708 = vand.u32 %v82, 4294901760
    %v709 = vsub.f32 %v82, %v708
    %v710 = vand.u32 %v709, 4294901760
    %711 = vmatpush.msra.mxu0 %v710
    %v712 = vand.u32 %v81, 4294901760
    %v713 = vsub.f32 %v81, %v712
    %v714 = vand.u32 %v713, 4294901760
    %715 = vmatpush.msra.mxu0 %v714
    %v716 = vand.u32 %v80, 4294901760
    %v717 = vsub.f32 %v80, %v716
    %v718 = vand.u32 %v717, 4294901760
    %719 = vmatpush.msra.mxu0 %v718
    %v720 = vand.u32 %v79, 4294901760
    %v721 = vsub.f32 %v79, %v720
    %v722 = vand.u32 %v721, 4294901760
    %723 = vmatpush.msra.mxu0 %v722
    %v724 = vand.u32 %v78, 4294901760
    %v725 = vsub.f32 %v78, %v724
    %v726 = vand.u32 %v725, 4294901760
    %727 = vmatpush.msra.mxu0 %v726
    %v728 = vand.u32 %v77, 4294901760
    %v729 = vsub.f32 %v77, %v728
    %v730 = vand.u32 %v729, 4294901760
    %731 = vmatpush.msra.mxu0 %v730
    %v732 = vand.u32 %v76, 4294901760
    %v733 = vsub.f32 %v76, %v732
    %v734 = vand.u32 %v733, 4294901760
    %735 = vmatpush.msra.mxu0 %v734
    %v736 = vand.u32 %v12, 4294901760
    %737 = vmatmul.f32.gmra.mxu0 %v736
    %v738 = vpop.f32.mrf.mxu0
    %v739 = vadd.f32 %v580, %v738
    %v740 = vand.u32 %v13, 4294901760
    %741 = vmatmul.f32.gmra.mxu0 %v740
    %v742 = vpop.f32.mrf.mxu0
    %v743 = vadd.f32 %v586, %v742
    %v744 = vand.u32 %v14, 4294901760
    %745 = vmatmul.f32.gmra.mxu0 %v744
    %v746 = vpop.f32.mrf.mxu0
    %v747 = vadd.f32 %v592, %v746
    %v748 = vand.u32 %v15, 4294901760
    %749 = vmatmul.f32.gmra.mxu0 %v748
    %v750 = vpop.f32.mrf.mxu0
    %v751 = vadd.f32 %v598, %v750
    %v752 = vand.u32 %v16, 4294901760
    %753 = vmatmul.f32.gmra.mxu0 %v752
    %v754 = vpop.f32.mrf.mxu0
    %v755 = vadd.f32 %v604, %v754
    %v756 = vand.u32 %v17, 4294901760
    %757 = vmatmul.f32.gmra.mxu0 %v756
    %v758 = vpop.f32.mrf.mxu0
    %v759 = vadd.f32 %v610, %v758
    %v760 = vand.u32 %v18, 4294901760
    %761 = vmatmul.f32.gmra.mxu0 %v760
    %v762 = vpop.f32.mrf.mxu0
    %v763 = vadd.f32 %v616, %v762
    %v764 = vand.u32 %v19, 4294901760
    %765 = vmatmul.f32.gmra.mxu0 %v764
    %v766 = vpop.f32.mrf.mxu0
    %v767 = vadd.f32 %v622, %v766
    %v768 = vand.u32 %v20, 4294901760
    %769 = vmatmul.f32.gmra.mxu0 %v768
    %v770 = vpop.f32.mrf.mxu0
    %v771 = vadd.f32 %v628, %v770
    %v772 = vand.u32 %v21, 4294901760
    %773 = vmatmul.f32.gmra.mxu0 %v772
    %v774 = vpop.f32.mrf.mxu0
    %v775 = vadd.f32 %v634, %v774
    %v776 = vand.u32 %v22, 4294901760
    %777 = vmatmul.f32.gmra.mxu0 %v776
    %v778 = vpop.f32.mrf.mxu0
    %v779 = vadd.f32 %v640, %v778
    %v780 = vand.u32 %v23, 4294901760
    %781 = vmatmul.f32.gmra.mxu0 %v780
    %v782 = vpop.f32.mrf.mxu0
    %v783 = vadd.f32 %v646, %v782
    %v784 = vand.u32 %v24, 4294901760
    %785 = vmatmul.f32.gmra.mxu0 %v784
    %v786 = vpop.f32.mrf.mxu0
    %v787 = vadd.f32 %v652, %v786
    %v788 = vand.u32 %v25, 4294901760
    %789 = vmatmul.f32.gmra.mxu0 %v788
    %v790 = vpop.f32.mrf.mxu0
    %v791 = vadd.f32 %v658, %v790
    %v792 = vand.u32 %v26, 4294901760
    %793 = vmatmul.f32.gmra.mxu0 %v792
    %v794 = vpop.f32.mrf.mxu0
    %v795 = vadd.f32 %v664, %v794
    %v796 = vand.u32 %v27, 4294901760
    %797 = vmatmul.f32.gmra.mxu0 %v796
    %v798 = vpop.f32.mrf.mxu0
    %v799 = vadd.f32 %v670, %v798
    %800 = vdwg.mxu0
    %v801 = vand.u32 %v91, 4294901760
    %802 = vmatpush.msra.mxu0 %v801
    %v803 = vand.u32 %v90, 4294901760
    %804 = vmatpush.msra.mxu0 %v803
    %v805 = vand.u32 %v89, 4294901760
    %806 = vmatpush.msra.mxu0 %v805
    %v807 = vand.u32 %v88, 4294901760
    %808 = vmatpush.msra.mxu0 %v807
    %v809 = vand.u32 %v87, 4294901760
    %810 = vmatpush.msra.mxu0 %v809
    %v811 = vand.u32 %v86, 4294901760
    %812 = vmatpush.msra.mxu0 %v811
    %v813 = vand.u32 %v85, 4294901760
    %814 = vmatpush.msra.mxu0 %v813
    %v815 = vand.u32 %v84, 4294901760
    %816 = vmatpush.msra.mxu0 %v815
    %v817 = vand.u32 %v83, 4294901760
    %818 = vmatpush.msra.mxu0 %v817
    %v819 = vand.u32 %v82, 4294901760
    %820 = vmatpush.msra.mxu0 %v819
    %v821 = vand.u32 %v81, 4294901760
    %822 = vmatpush.msra.mxu0 %v821
    %v823 = vand.u32 %v80, 4294901760
    %824 = vmatpush.msra.mxu0 %v823
    %v825 = vand.u32 %v79, 4294901760
    %826 = vmatpush.msra.mxu0 %v825
    %v827 = vand.u32 %v78, 4294901760
    %828 = vmatpush.msra.mxu0 %v827
    %v829 = vand.u32 %v77, 4294901760
    %830 = vmatpush.msra.mxu0 %v829
    %v831 = vand.u32 %v76, 4294901760
    %832 = vmatpush.msra.mxu0 %v831
    %v833 = vand.u32 %v12, 4294901760
    %834 = vmatmul.f32.gmra.mxu0 %v833
    %v835 = vpop.f32.mrf.mxu0
    %v836 = vadd.f32 %v739, %v835
    %v837 = vand.u32 %v13, 4294901760
    %838 = vmatmul.f32.gmra.mxu0 %v837
    %v839 = vpop.f32.mrf.mxu0
    %v840 = vadd.f32 %v743, %v839
    %v841 = vand.u32 %v14, 4294901760
    %842 = vmatmul.f32.gmra.mxu0 %v841
    %v843 = vpop.f32.mrf.mxu0
    %v844 = vadd.f32 %v747, %v843
    %v845 = vand.u32 %v15, 4294901760
    %846 = vmatmul.f32.gmra.mxu0 %v845
    %v847 = vpop.f32.mrf.mxu0
    %v848 = vadd.f32 %v751, %v847
    %v849 = vand.u32 %v16, 4294901760
    %850 = vmatmul.f32.gmra.mxu0 %v849
    %v851 = vpop.f32.mrf.mxu0
    %v852 = vadd.f32 %v755, %v851
    %v853 = vand.u32 %v17, 4294901760
    %854 = vmatmul.f32.gmra.mxu0 %v853
    %v855 = vpop.f32.mrf.mxu0
    %v856 = vadd.f32 %v759, %v855
    %v857 = vand.u32 %v18, 4294901760
    %858 = vmatmul.f32.gmra.mxu0 %v857
    %v859 = vpop.f32.mrf.mxu0
    %v860 = vadd.f32 %v763, %v859
    %v861 = vand.u32 %v19, 4294901760
    %862 = vmatmul.f32.gmra.mxu0 %v861
    %v863 = vpop.f32.mrf.mxu0
    %v864 = vadd.f32 %v767, %v863
    %v865 = vand.u32 %v20, 4294901760
    %866 = vmatmul.f32.gmra.mxu0 %v865
    %v867 = vpop.f32.mrf.mxu0
    %v868 = vadd.f32 %v771, %v867
    %v869 = vand.u32 %v21, 4294901760
    %870 = vmatmul.f32.gmra.mxu0 %v869
    %v871 = vpop.f32.mrf.mxu0
    %v872 = vadd.f32 %v775, %v871
    %v873 = vand.u32 %v22, 4294901760
    %874 = vmatmul.f32.gmra.mxu0 %v873
    %v875 = vpop.f32.mrf.mxu0
    %v876 = vadd.f32 %v779, %v875
    %v877 = vand.u32 %v23, 4294901760
    %878 = vmatmul.f32.gmra.mxu0 %v877
    %v879 = vpop.f32.mrf.mxu0
    %v880 = vadd.f32 %v783, %v879
    %v881 = vand.u32 %v24, 4294901760
    %882 = vmatmul.f32.gmra.mxu0 %v881
    %v883 = vpop.f32.mrf.mxu0
    %v884 = vadd.f32 %v787, %v883
    %v885 = vand.u32 %v25, 4294901760
    %886 = vmatmul.f32.gmra.mxu0 %v885
    %v887 = vpop.f32.mrf.mxu0
    %v888 = vadd.f32 %v791, %v887
    %v889 = vand.u32 %v26, 4294901760
    %890 = vmatmul.f32.gmra.mxu0 %v889
    %v891 = vpop.f32.mrf.mxu0
    %v892 = vadd.f32 %v795, %v891
    %v893 = vand.u32 %v27, 4294901760
    %894 = vmatmul.f32.gmra.mxu0 %v893
    %v895 = vpop.f32.mrf.mxu0
    %v896 = vadd.f32 %v799, %v895
    %897 = vdwg.mxu0
    %v898 = vmul.f32 %v836, %v836
    %v899 = vmul.f32 %v840, %v840
    %v900 = vmul.f32 %v844, %v844
    %v901 = vmul.f32 %v848, %v848
    %v902 = vmul.f32 %v852, %v852
    %v903 = vmul.f32 %v856, %v856
    %v904 = vmul.f32 %v860, %v860
    %v905 = vmul.f32 %v864, %v864
    %v906 = vmul.f32 %v868, %v868
    %v907 = vmul.f32 %v872, %v872
    %v908 = vmul.f32 %v876, %v876
    %v909 = vmul.f32 %v880, %v880
    %v910 = vmul.f32 %v884, %v884
    %v911 = vmul.f32 %v888, %v888
    %v912 = vmul.f32 %v892, %v892
    %v913 = vmul.f32 %v896, %v896
    %vm914 = vcmask 261120
    %v915 = vsel %vm914, %v898, 0.0
    %916 = vadd.xlane.f32.xlu0 %v915
    %v917 = vpop.xlane.xlu0 %916
    %v918 = vsel %vm914, %v899, 0.0
    %919 = vadd.xlane.f32.xlu0 %v918
    %v920 = vpop.xlane.xlu0 %919
    %v921 = vsel %vm914, %v900, 0.0
    %922 = vadd.xlane.f32.xlu0 %v921
    %v923 = vpop.xlane.xlu0 %922
    %v924 = vsel %vm914, %v901, 0.0
    %925 = vadd.xlane.f32.xlu0 %v924
    %v926 = vpop.xlane.xlu0 %925
    %v927 = vsel %vm914, %v902, 0.0
    %928 = vadd.xlane.f32.xlu0 %v927
    %v929 = vpop.xlane.xlu0 %928
    %v930 = vsel %vm914, %v903, 0.0
    %931 = vadd.xlane.f32.xlu0 %v930
    %v932 = vpop.xlane.xlu0 %931
    %v933 = vsel %vm914, %v904, 0.0
    %934 = vadd.xlane.f32.xlu0 %v933
    %v935 = vpop.xlane.xlu0 %934
    %v936 = vsel %vm914, %v905, 0.0
    %937 = vadd.xlane.f32.xlu0 %v936
    %v938 = vpop.xlane.xlu0 %937
    %v939 = vsel %vm914, %v906, 0.0
    %940 = vadd.xlane.f32.xlu0 %v939
    %v941 = vpop.xlane.xlu0 %940
    %v942 = vsel %vm914, %v907, 0.0
    %943 = vadd.xlane.f32.xlu0 %v942
    %v944 = vpop.xlane.xlu0 %943
    %v945 = vsel %vm914, %v908, 0.0
    %946 = vadd.xlane.f32.xlu0 %v945
    %v947 = vpop.xlane.xlu0 %946
    %v948 = vsel %vm914, %v909, 0.0
    %949 = vadd.xlane.f32.xlu0 %v948
    %v950 = vpop.xlane.xlu0 %949
    %v951 = vsel %vm914, %v910, 0.0
    %952 = vadd.xlane.f32.xlu0 %v951
    %v953 = vpop.xlane.xlu0 %952
    %v954 = vsel %vm914, %v911, 0.0
    %955 = vadd.xlane.f32.xlu0 %v954
    %v956 = vpop.xlane.xlu0 %955
    %v957 = vsel %vm914, %v912, 0.0
    %958 = vadd.xlane.f32.xlu0 %v957
    %v959 = vpop.xlane.xlu0 %958
    %v960 = vsel %vm914, %v913, 0.0
    %961 = vadd.xlane.f32.xlu0 %v960
    %v962 = vpop.xlane.xlu0 %961
    %v963 = vsub.f32 %v917, %v45
    %v964 = vsub.f32 %v920, %v47
    %v965 = vsub.f32 %v923, %v49
    %v966 = vsub.f32 %v926, %v51
    %v967 = vsub.f32 %v929, %v53
    %v968 = vsub.f32 %v932, %v55
    %v969 = vsub.f32 %v935, %v57
    %v970 = vsub.f32 %v938, %v59
    %v971 = vsub.f32 %v941, %v61
    %v972 = vsub.f32 %v944, %v63
    %v973 = vsub.f32 %v947, %v65
    %v974 = vsub.f32 %v950, %v67
    %v975 = vsub.f32 %v953, %v69
    %v976 = vsub.f32 %v956, %v71
    %v977 = vsub.f32 %v959, %v73
    %v978 = vsub.f32 %v962, %v75
    %v979 = vmul.f32 %v963, 0.5
    %v980 = vmul.f32 %v964, 0.5
    %v981 = vmul.f32 %v965, 0.5
    %v982 = vmul.f32 %v966, 0.5
    %v983 = vmul.f32 %v967, 0.5
    %v984 = vmul.f32 %v968, 0.5
    %v985 = vmul.f32 %v969, 0.5
    %v986 = vmul.f32 %v970, 0.5
    %v987 = vmul.f32 %v971, 0.5
    %v988 = vmul.f32 %v972, 0.5
    %v989 = vmul.f32 %v973, 0.5
    %v990 = vmul.f32 %v974, 0.5
    %v991 = vmul.f32 %v975, 0.5
    %v992 = vmul.f32 %v976, 0.5
    %v993 = vmul.f32 %v977, 0.5
    %v994 = vmul.f32 %v978, 0.5
    %v1011 = vlaneseq
    %v1012 = vand.u32 %v1011, 127
    %v1013 = vperm.slane %v979, %v1012
    %v1014 = vadd.s32 %v1012, 4294967288
    %v1015 = vperm.slane %v980, %v1014
    %vm1016 = vcmask 130112
    %v1017 = vsel %vm1016, %v1015, %v1013
    %v1018 = vadd.s32 %v1012, 4294967280
    %v1019 = vperm.slane %v981, %v1018
    %vm1020 = vcmask 195712
    %v1021 = vsel %vm1020, %v1019, %v1017
    %v1022 = vadd.s32 %v1012, 4294967272
    %v1023 = vperm.slane %v982, %v1022
    %vm1024 = vcmask 261312
    %v1025 = vsel %vm1024, %v1023, %v1021
    %v1026 = vadd.s32 %v1012, 4294967264
    %v1027 = vperm.slane %v983, %v1026
    %vm1028 = vcmask 326912
    %v1029 = vsel %vm1028, %v1027, %v1025
    %v1030 = vadd.s32 %v1012, 4294967256
    %v1031 = vperm.slane %v984, %v1030
    %vm1032 = vcmask 392512
    %v1033 = vsel %vm1032, %v1031, %v1029
    %v1034 = vadd.s32 %v1012, 4294967248
    %v1035 = vperm.slane %v985, %v1034
    %vm1036 = vcmask 458112
    %v1037 = vsel %vm1036, %v1035, %v1033
    %v1038 = vadd.s32 %v1012, 4294967240
    %v1039 = vperm.slane %v986, %v1038
    %vm1040 = vcmask 523712
    %v1041 = vsel %vm1040, %v1039, %v1037
    %v1042 = vadd.s32 %v1012, 4294967232
    %v1043 = vperm.slane %v987, %v1042
    %vm1044 = vcmask 589312
    %v1045 = vsel %vm1044, %v1043, %v1041
    %v1046 = vadd.s32 %v1012, 4294967224
    %v1047 = vperm.slane %v988, %v1046
    %vm1048 = vcmask 654912
    %v1049 = vsel %vm1048, %v1047, %v1045
    %v1050 = vadd.s32 %v1012, 4294967216
    %v1051 = vperm.slane %v989, %v1050
    %vm1052 = vcmask 720512
    %v1053 = vsel %vm1052, %v1051, %v1049
    %v1054 = vadd.s32 %v1012, 4294967208
    %v1055 = vperm.slane %v990, %v1054
    %vm1056 = vcmask 786112
    %v1057 = vsel %vm1056, %v1055, %v1053
    %v1058 = vadd.s32 %v1012, 4294967200
    %v1059 = vperm.slane %v991, %v1058
    %vm1060 = vcmask 851712
    %v1061 = vsel %vm1060, %v1059, %v1057
    %v1062 = vadd.s32 %v1012, 4294967192
    %v1063 = vperm.slane %v992, %v1062
    %vm1064 = vcmask 917312
    %v1065 = vsel %vm1064, %v1063, %v1061
    %v1066 = vadd.s32 %v1012, 4294967184
    %v1067 = vperm.slane %v993, %v1066
    %vm1068 = vcmask 982912
    %v1069 = vsel %vm1068, %v1067, %v1065
    %v1070 = vadd.s32 %v1012, 4294967176
    %v1071 = vperm.slane %v994, %v1070
    %vm1072 = vcmask 1048512
    %v1073 = vsel %vm1072, %v1071, %v1069
    %1075 = vst [vmem:[#allocation2] sm:$0x1] %v1073
    // Predicated region
    $region10: #{tpu_custom_call.1} parent=1 // pred_check
      _
    $region11: #{tpu_custom_call.1} parent=1 // pred_check_branch
      %1077 = sbr.rel (0) target = $region13
    $region12: #{tpu_custom_call.1} parent=1 // pred_region
      %1079 = vsyncadd [#allocation3], 0
      %s1081 = sshll.u32 [#allocation2], 4
      %s1082 = int_to_ptr.vmem [resolvable:$true] %s1081
      %s1083 = sshll.u32 %s2, 4
      %s1084 = int_to_ptr.hbm [resolvable:$true] %s1083
      %1086 = dma.vmem_to_hbm [thread:$0]  %s1082, 16, %s1084, [#allocation3]
    $region13: #{tpu_custom_call.1} parent=1 // pred_fallthru
      _
    // Predicated region
    $region14: #{tpu_custom_call.1} parent=1 // pred_check
      _
    $region15: #{tpu_custom_call.1} parent=1 // pred_check_branch
      %1088 = sbr.rel (0) target = $region17
    $region16: #{tpu_custom_call.1} parent=1 // pred_region
      %1090 = dma.done [#allocation3], 16
    $region17: #{tpu_custom_call.1} parent=1 // pred_fallthru
      _
    %1091 = vsyncpa [#allocation3], 1

</llo_original>
